<compile_context>
chip_gen: v7x
topology: tpu7x:2x2x1
jax: 0.10.0
libtpu: 0.0.40
codegen_flags: <defaults>
</compile_context>

<pallas_src>
import jax
import jax.numpy as jnp
from jax.experimental import pallas as pl
from jax.experimental.pallas import tpu as pltpu


_LANES = 128
_TARGET_TILE_BYTES = 2 * 1024 * 1024      # ~2 MiB per VMEM buffer
_SPLIT_THRESHOLD_BYTES = 1 * 1024 * 1024  # slabs > 1 MiB get >= 2 grid blocks


# ---------------------------------------------------------------------------
# Backward kernel: out = (-lambda) * grad, lambda read from SMEM each step.
# ---------------------------------------------------------------------------
def _neg_scale_kernel(lam_ref, g_ref, o_ref):
    neg_lam = -lam_ref[0]                                   # f32 scalar (SMEM)
    o_ref[...] = (g_ref[...].astype(jnp.float32) * neg_lam).astype(o_ref.dtype)


def _neg_scale_pallas(g, lam):
    """Compute -lam * g with a tiled, lane-dense Pallas kernel."""
    orig_shape = g.shape
    dtype = g.dtype
    itemsize = jnp.dtype(dtype).itemsize
    total = g.size
    if total == 0:
        return g

    # Native sublane packing: f32 -> 8 rows, bf16 -> 16, int8/fp8 -> 32.
    sub = max(8, 32 // itemsize)

    flat = g.reshape(-1)
    rem = total % _LANES
    padded_total = total if rem == 0 else total + (_LANES - rem)
    if padded_total != total:
        # TODO(synk): truly ragged (non multiple-of-128) grads pay one minimal
        # pad + slice copy; everything 128-aligned takes the zero-copy path.
        flat = jnp.pad(flat, (0, padded_total - total))
    rows = padded_total // _LANES
    slab = flat.reshape(rows, _LANES)

    row_bytes = _LANES * itemsize
    slab_bytes = rows * row_bytes
    if slab_bytes <= _SPLIT_THRESHOLD_BYTES:
        # Small slab: one full-array block (always layout-legal).
        tile_rows = rows
        grid = (1,)
    else:
        # Byte-sized tile cap (~2 MiB/buffer), sublane-aligned.
        max_rows = max(sub, (_TARGET_TILE_BYTES // row_bytes) // sub * sub)
        # Guarantee >= 2 blocks so v7x's two TensorCores both stream.
        half_rows = ((rows + 1) // 2 + sub - 1) // sub * sub
        tile_rows = min(max_rows, half_rows)
        grid = (pl.cdiv(rows, tile_rows),)

    lam_arr = jnp.asarray(lam, dtype=jnp.float32).reshape(1)

    out = pl.pallas_call(
        _neg_scale_kernel,
        out_shape=jax.ShapeDtypeStruct(slab.shape, slab.dtype),
        grid=grid,
        in_specs=[
            pl.BlockSpec(memory_space=pltpu.MemorySpace.SMEM),     # lambda
            pl.BlockSpec((tile_rows, _LANES), lambda i: (i, 0)),   # grad slab
        ],
        out_specs=pl.BlockSpec((tile_rows, _LANES), lambda i: (i, 0)),
        compiler_params=pltpu.CompilerParams(
            dimension_semantics=("parallel",)),
        cost_estimate=pl.CostEstimate(
            flops=padded_total,
            transcendentals=0,
            bytes_accessed=2 * padded_total * itemsize),
        input_output_aliases={1: 0},    # in-place scale of the grad buffer
    )(lam_arr, slab)

    if padded_total != total:
        out = out.reshape(-1)[:total]
    return out.reshape(orig_shape)


# ---------------------------------------------------------------------------
# Gradient reversal with custom VJP. lambda is a traced scalar; its cotangent
# is zero (PyTorch's backward returns None for it).
# ---------------------------------------------------------------------------
@jax.custom_vjp
def _grl(x, lam):
    return x                      # forward is identity: no kernel


def _grl_fwd(x, lam):
    return x, lam


def _grl_bwd(lam, g):
    return _neg_scale_pallas(g, lam), jnp.zeros_like(lam)


_grl.defvjp(_grl_fwd, _grl_bwd)


def gradient_reversal(x, lambda_grl):
    lam = jnp.asarray(lambda_grl, dtype=jnp.float32)
    return _grl(x, lam)


class GradientReversalLayerModule:
    """JAX/Pallas equivalent of the PyTorch GradientReversalLayerModule."""

    def __init__(self, lambda_grl: float = 1.0):
        self.lambda_grl = float(lambda_grl)

    def __call__(self, x, lambda_grl=None):
        lam = self.lambda_grl if lambda_grl is None else lambda_grl
        return gradient_reversal(x, lam)


# ---------------------------------------------------------------------------
# Main
# ---------------------------------------------------------------------------
if __name__ == "__main__":
    key = jax.random.PRNGKey(0)

    # NCHW input, same convention as PyTorch.
    x = jax.random.normal(key, (2, 4, 16, 16), dtype=jnp.float32)
    module = GradientReversalLayerModule(lambda_grl=1.5)

    # Forward: exact identity (no kernel launched).
    y = jax.block_until_ready(module(x))
    assert y.shape == x.shape and y.dtype == x.dtype
    assert bool(jnp.all(y == x))

    # Backward: gradient reversed and scaled by lambda (single-block kernel).
    grad = jax.block_until_ready(jax.grad(lambda v: jnp.sum(module(v)))(x))
    assert bool(jnp.allclose(grad, -1.5 * jnp.ones_like(x)))

    # Weighted loss checks the scale path end-to-end.
    w = jax.random.normal(jax.random.PRNGKey(1), x.shape, dtype=jnp.float32)
    grad_w = jax.block_until_ready(
        jax.grad(lambda v: jnp.sum(w * module(v)))(x))
    assert bool(jnp.allclose(grad_w, -1.5 * w, atol=1e-6))

    # Runtime lambda override (SMEM scalar -> no per-value kernel recompile).
    lam2 = jnp.float32(0.25)
    grad_l = jax.block_until_ready(
        jax.grad(lambda v: jnp.sum(module(v, lam2)))(x))
    assert bool(jnp.allclose(grad_l, -0.25 * jnp.ones_like(x)))

    # Ragged total (not a multiple of 128): minimal pad/slice fallback path.
    x_r = jax.random.normal(key, (3, 5, 7, 11), dtype=jnp.float32)
    grad_r = jax.block_until_ready(
        jax.grad(lambda v: jnp.sum(module(v)))(x_r))
    assert bool(jnp.allclose(grad_r, -1.5 * jnp.ones_like(x_r)))

    # Multi-block path with a partial last block (rows=2056 -> 2 blocks).
    x_big = jax.random.normal(key, (2, 4, 257, 128), dtype=jnp.float32)
    grad_big = jax.block_until_ready(
        jax.grad(lambda v: jnp.sum(module(v)))(x_big))
    assert bool(jnp.allclose(grad_big, -1.5 * jnp.ones_like(x_big)))

    # bf16 grads (dtype-aware sublane handling, upcast-scale-downcast).
    x_bf = x.astype(jnp.bfloat16)
    grad_bf = jax.block_until_ready(
        jax.grad(lambda v: jnp.sum(module(v)))(x_bf))
    assert grad_bf.dtype == jnp.bfloat16
    assert bool(jnp.allclose(grad_bf.astype(jnp.float32),
                             -1.5 * jnp.ones(x.shape, jnp.float32)))

    print("KERNEL_OK")
</pallas_src>

<mosaic_0001>
module attributes {stable_mosaic.version = 11 : i64} {
  func.func @_neg_scale_kernel(%arg0: i32, %arg1: memref<1xf32, #tpu.memory_space<smem>>, %arg2: memref<16x128xf32, #tpu.memory_space<vmem>>, %arg3: memref<16x128xf32, #tpu.memory_space<vmem>>) attributes {dimension_semantics = [#tpu.dimension_semantics<parallel>], iteration_bounds = array<i64: 1>, scalar_prefetch = 0 : i64, scratch_operands = 0 : i64, tpu.core_type = #tpu.core_type<tc>, window_params = [{transform_indices = @transform_0, window_bounds = array<i64: 1>}, {transform_indices = @transform_1, window_bounds = array<i64: 16, 128>}, {transform_indices = @transform_2, window_bounds = array<i64: 16, 128>}]} {
    %c0 = arith.constant 0 : index
    %0 = memref.load %arg1[%c0] : memref<1xf32, #tpu.memory_space<smem>>
    %cst = arith.constant 0.000000e+00 : f32
    %1 = arith.subf %cst, %0 : f32
    %c0_0 = arith.constant 0 : index
    %c0_1 = arith.constant 0 : index
    %2 = vector.load %arg2[%c0_0, %c0_1] : memref<16x128xf32, #tpu.memory_space<vmem>>, vector<16x128xf32>
    %3 = vector.broadcast %1 : f32 to vector<16x128xf32>
    %4 = arith.mulf %2, %3 : vector<16x128xf32>
    %c0_2 = arith.constant 0 : index
    %c0_3 = arith.constant 0 : index
    %5 = vector.load %arg3[%c0_2, %c0_3] : memref<16x128xf32, #tpu.memory_space<vmem>>, vector<16x128xf32>
    tpu.vector_store %arg3[%c0_2, %c0_3], %4 {strides = array<i32>} : memref<16x128xf32, #tpu.memory_space<vmem>>, vector<16x128xf32>,
    return
  }
  func.func @transform_0(%arg0: i32) -> i32 {
    %c0_i32 = arith.constant 0 : i32
    %c0_i32_0 = arith.constant 0 : i32
    return %c0_i32 : i32
  }
  func.func @transform_1(%arg0: i32) -> (i32, i32) {
    %c0_i32 = arith.constant 0 : i32
    %c0_i32_0 = arith.constant 0 : i32
    return %arg0, %c0_i32 : i32, i32
  }
  func.func @transform_2(%arg0: i32) -> (i32, i32) {
    %c0_i32 = arith.constant 0 : i32
    %c0_i32_0 = arith.constant 0 : i32
    return %arg0, %c0_i32 : i32, i32
  }
}

</mosaic_0001>

<llo_original>
// kernel: tpu_custom_call.1
$region0: #{tpu_custom_call.1}
  #allocation0 [shape = 'u32[]', space=smem, size = 0x4, offset = 0x4, fixed_abs, tag = 'smem constant byte address 0x4 - core index']
  #allocation1 [shape = 'u32[144,128]{1,0:T(1,128)}', space=vmem, size = 0x12000, scoped, tag = 'internal scratch']
  #allocation2 [shape = 'f32[1]{0:T(128)S(6)}', space=smem, size = 0x200, scoped, tag = 'scoped memory for tpu_custom_call.1']
  %s0 = inlined_call_operand.<no memory space> [shape: f32[1], index: 0, kind: input, shape index: {}]
  %s1 = inlined_call_operand.hbm [shape: f32[16,128], index: 1, kind: input, shape index: {}, may-alias: {1,2}]
  %s2 = inlined_call_operand.hbm [shape: f32[16,128], index: 2, kind: output, shape index: {}, may-alias: {1,2}]
  %s3 = sld [smem:[#allocation0]]
  $region22: #{tpu_custom_call.1} parent=0
    _
  %s5 = ssub.s32 1, %s3
  %s6 = scalar_select 0, %s5, %s3
  %7 = sst [smem:[#allocation2]] %s0
  $region1: #{tpu_custom_call.1} parent=0
    #allocation3 [shape = 'u8[8192]{0}', space=vmem, size = 0x2000, scoped, tag = 'input window, operand 1, single buffered']
    #allocation4 [shape = 's32[1]{0}', space=sflag, size = 0x4, scoped, tag = 'scoped memory for tpu_custom_call.1']
    #allocation5 [shape = 's32[1]{0}', space=sflag, size = 0x4, scoped, tag = 'scoped memory for tpu_custom_call.1']
    #allocation6 [shape = 'u8[8192]{0}', space=vmem, size = 0x2000, scoped, tag = 'output window, operand 0, single buffered']
    %8 = vsyncpa [#allocation4], 0
    %9 = vsyncpa [#allocation5], 0
    // Predicated region
    $region2: #{tpu_custom_call.1} parent=1 // pred_check
      _
    $region3: #{tpu_custom_call.1} parent=1 // pred_check_branch
      %11 = sbr.rel (0) target = $region5
    $region4: #{tpu_custom_call.1} parent=1 // pred_region
      _
    $region5: #{tpu_custom_call.1} parent=1 // pred_fallthru
      _
    // Predicated region
    $region6: #{tpu_custom_call.1} parent=1 // pred_check
      _
    $region7: #{tpu_custom_call.1} parent=1 // pred_check_branch
      %13 = sbr.rel (0) target = $region9
    $region8: #{tpu_custom_call.1} parent=1 // pred_region
      %s15 = ssub.s32 256, 256
      %16 = vsyncadd [#allocation4], %s15
      %s17 = sshll.u32 [#allocation3], 4
      %s18 = int_to_ptr.vmem [resolvable:$true] %s17
      %23 = dma.hbm_to_vmem [thread:$0]  %s1, 256, %s18, [#allocation4], 128, 128, 8
    $region9: #{tpu_custom_call.1} parent=1 // pred_fallthru
      _
    // Predicated region
    $region10: #{tpu_custom_call.1} parent=1 // pred_check
      _
    $region11: #{tpu_custom_call.1} parent=1 // pred_check_branch
      %25 = sbr.rel (0) target = $region13
    $region12: #{tpu_custom_call.1} parent=1 // pred_region
      %26 = dma.done [#allocation4], 256
    $region13: #{tpu_custom_call.1} parent=1 // pred_fallthru
      _
    %s27 = sld [smem:[#allocation2]]
    %s28 = ssub.f32 0.0, %s27
    %v29 = vld [vmem:[#allocation3] sm:$0xff]
    %v30 = vld [vmem:[#allocation3 + $0x8] sm:$0xff]
    %v31 = vstv %s28
    %v32 = vmul.f32 %v29, %v31
    %v33 = vmul.f32 %v30, %v31
    %34 = vst [vmem:[#allocation6] sm:$0xff] %v32
    %35 = vst [vmem:[#allocation6 + $0x8] sm:$0xff] %v33
    // Predicated region
    $region14: #{tpu_custom_call.1} parent=1 // pred_check
      _
    $region15: #{tpu_custom_call.1} parent=1 // pred_check_branch
      %37 = sbr.rel (0) target = $region17
    $region16: #{tpu_custom_call.1} parent=1 // pred_region
      %s39 = ssub.s32 256, 256
      %40 = vsyncadd [#allocation5], %s39
      %s41 = sshll.u32 [#allocation6], 4
      %s42 = int_to_ptr.vmem [resolvable:$true] %s41
      %47 = dma.vmem_to_hbm [thread:$0]  %s42, 256, %s2, [#allocation5], 128, 128, 8
    $region17: #{tpu_custom_call.1} parent=1 // pred_fallthru
      _
    // Predicated region
    $region18: #{tpu_custom_call.1} parent=1 // pred_check
      _
    $region19: #{tpu_custom_call.1} parent=1 // pred_check_branch
      %49 = sbr.rel (0) target = $region21
    $region20: #{tpu_custom_call.1} parent=1 // pred_region
      %50 = dma.done [#allocation5], 256
    $region21: #{tpu_custom_call.1} parent=1 // pred_fallthru
      _
    %51 = vsyncpa [#allocation4], 1
    %52 = vsyncpa [#allocation5], 1

</llo_original>
